<compile_context>
chip_gen: v6e
topology: v6e:2x2x1
jax: 0.10.0
libtpu: 0.0.40
codegen_flags: <defaults>
</compile_context>

<pallas_src>
import jax
import jax.numpy as jnp
from jax.experimental import pallas as pl
from jax.experimental.pallas import tpu as pltpu

# ---- small, module-consistent sizes -----------------------------------------
N_SAMPLES = 2048          # small stand-in for 2**14
T = 8                     # time frames
W = N_SAMPLES // T        # 256 samples per frame
N_BANDS = 256             # 32 * 8 so avg_pool2d((32,1)) -> view(B, 8, -1)
N_CHROMA = 12
N_MFCC = 12
POOL = N_BANDS // 8       # 32
F_PACK = 128              # packed small-feature slab, padded to 128 lanes

# packed column layout inside the F_PACK slab
COL_LOUD = 0                          # loudness^2 (sum over bands of mag^2)
COL_CHROMA = 1
COL_MFCC = COL_CHROMA + N_CHROMA      # 13
COL_POOL = COL_MFCC + N_MFCC          # 25
N_FEAT = COL_POOL + 8                 # 33 real columns, rest is zero padding


# ---- Pallas kernel: all per-block hot-path compute ---------------------------
def audio_features_kernel(frames_ref, basis_ref, feat_mag_ref, feat_dct_ref,
                          specs_ref, packed_ref, phase_ref):
    bt = phase_ref.shape[0]                                   # batch elems this step

    # frames arrive f32 straight from HBM; bf16 cast is free VPU filler here
    fr = frames_ref[...].astype(jnp.bfloat16)                 # (bt*T, W)
    # fused real|imag filterbank: single MXU pass, lane-dense N = 2*n_bands
    spec = jnp.dot(fr, basis_ref[...],
                   preferred_element_type=jnp.float32)        # (bt*T, 2*NB) f32
    specs_ref[...] = spec.astype(jnp.bfloat16)                # bf16 writeback (half HBM)

    real = spec[:, :N_BANDS]
    imag = spec[:, N_BANDS:]
    mag2 = real * real + imag * imag
    mag = jnp.sqrt(mag2)
    # 0.5*log(mag2) instead of log(sqrt(mag2)): sqrt and log are independent
    # EUP ops, no serial chain (matters on v5e's single f32-only EUP).
    logmag = 0.5 * jnp.log(mag2 + 1e-16)

    # loudness^2 = sum over bands of |spec|^2 -> XLU cross-lane reduction
    loud2 = jnp.sum(mag2, axis=-1, keepdims=True)             # (bt*T, 1)

    # small-feature matmuls: chroma + band pooling read mag, MFCC-DCT reads
    # log(mag).  Two K=256 MXU passes, no concatenated operand copy.
    packed = (jnp.dot(mag.astype(jnp.bfloat16), feat_mag_ref[...],
                      preferred_element_type=jnp.float32)
              + jnp.dot(logmag.astype(jnp.bfloat16), feat_dct_ref[...],
                        preferred_element_type=jnp.float32))  # (bt*T, 128)
    col = jax.lax.broadcasted_iota(jnp.int32, packed.shape, 1)
    packed_ref[...] = jnp.where(col == COL_LOUD, loud2, packed)

    # phase feature: mean_t sin(diff_t(angle)) via the cross-product identity,
    # with the divide done as an EUP rsqrt of mag^2 products.
    r3 = real.reshape(bt, T, N_BANDS)
    i3 = imag.reshape(bt, T, N_BANDS)
    m2 = mag2.reshape(bt, T, N_BANDS)
    num = i3[:, 1:, :] * r3[:, :-1, :] - r3[:, 1:, :] * i3[:, :-1, :]
    inv = jax.lax.rsqrt(jnp.maximum(m2[:, 1:, :] * m2[:, :-1, :], 1e-18))
    phase_ref[...] = jnp.mean(num * inv, axis=1)              # (bt, NB) lane-dense


# ---- deterministic parameter construction ------------------------------------
def make_params():
    n = jnp.arange(W, dtype=jnp.float32)
    hann = 0.5 - 0.5 * jnp.cos(2.0 * jnp.pi * n / (W - 1))
    freqs = jnp.geomspace(0.002, 0.45, N_BANDS).astype(jnp.float32)  # cycles/sample
    ang = 2.0 * jnp.pi * freqs[:, None] * n[None, :]
    basis_real = hann[None, :] * jnp.cos(ang)                 # (NB, W)
    basis_imag = -hann[None, :] * jnp.sin(ang)                # (NB, W)
    # fused (W, 2*NB): real in cols [0, NB), imag in cols [NB, 2*NB)
    basis = jnp.concatenate([basis_real.T, basis_imag.T], axis=1).astype(jnp.bfloat16)

    # chroma basis: pitch-class one-hot, row normalized   (12, NB)
    # TODO(synk): exact zounds ChromaScale basis unavailable; synthesized stand-in.
    pitch_class = jnp.mod(jnp.floor(12.0 * jnp.log2(freqs / freqs[0])), 12.0)
    pitch_class = pitch_class.astype(jnp.int32)
    onehot = (pitch_class[None, :] == jnp.arange(N_CHROMA)[:, None]).astype(jnp.float32)
    chroma_basis = onehot / jnp.maximum(onehot.sum(axis=1, keepdims=True), 1.0)

    # DCT-II basis (skip DC), coefficients 1..N_MFCC        (12, NB)
    # TODO(synk): exact MFCC class definition unavailable; using DCT-II of log-mag.
    j = jnp.arange(N_BANDS, dtype=jnp.float32)
    i = jnp.arange(1, N_MFCC + 1, dtype=jnp.float32)
    dct_basis = (jnp.sqrt(2.0 / N_BANDS)
                 * jnp.cos(jnp.pi / N_BANDS * (j[None, :] + 0.5) * i[:, None]))

    # block-average pooling matrix over bands              (8, NB)
    band_block = jnp.arange(N_BANDS) // POOL
    pool_basis = (band_block[None, :] == jnp.arange(8)[:, None]).astype(jnp.float32) / POOL

    # feat_mag acts on |spec| (chroma + band pooling); feat_dct acts on log|spec|
    # (MFCC).  Column 0 is reserved for loudness^2 (filled in-kernel via XLU sum).
    feat_mag = jnp.zeros((N_BANDS, F_PACK), jnp.float32)
    feat_mag = feat_mag.at[:, COL_CHROMA:COL_CHROMA + N_CHROMA].set(chroma_basis.T)
    feat_mag = feat_mag.at[:, COL_POOL:COL_POOL + 8].set(pool_basis.T)
    feat_dct = jnp.zeros((N_BANDS, F_PACK), jnp.float32)
    feat_dct = feat_dct.at[:, COL_MFCC:COL_MFCC + N_MFCC].set(dct_basis.T)
    return basis, feat_mag.astype(jnp.bfloat16), feat_dct.astype(jnp.bfloat16)


# ---- batch-block selection ----------------------------------------------------
def _choose_bt(B, cap=64):
    """Batch block Bt: as large as possible (M = Bt*T MXU rows per grid step),
    preferring exact divisors of B (zero padded rows), 8-aligned whenever the
    grid has more than one step (sublane alignment of the (Bt, n_bands) phase
    block), and >= 2 grid steps for larger batches (v7x dual TensorCores)."""
    if B <= cap:
        if B >= 32 and B % 16 == 0:
            return B // 2                      # two 8-aligned blocks
        return B                               # single full block
    best_bt, best_waste = cap, None
    for bt in range(cap - cap % 8, 7, -8):     # 8-aligned candidates, largest first
        waste = -(-B // bt) * bt - B
        if best_waste is None or waste < best_waste:
            best_bt, best_waste = bt, waste
            if waste == 0:
                break
    return best_bt


# ---- wrapper ------------------------------------------------------------------
def audio_features(x, basis, feat_mag, feat_dct):
    # x: (B, 1, n_samples)  (mirrors x.view(-1, 1, n_samples))
    x = x.reshape(-1, N_SAMPLES)
    B = x.shape[0]
    Bt = _choose_bt(B)
    nblk = pl.cdiv(B, Bt)
    Bp = nblk * Bt

    # framing glue: non-overlapping frames, time-major -> rows = batch*time
    frames = x.reshape(B, T, W).astype(jnp.float32)
    if Bp != B:
        frames = jnp.pad(frames, ((0, Bp - B), (0, 0), (0, 0)))
    frames = frames.reshape(Bp * T, W)          # f32; kernel casts to bf16

    out_shapes = (
        jax.ShapeDtypeStruct((Bp * T, 2 * N_BANDS), jnp.bfloat16),  # spec real|imag
        jax.ShapeDtypeStruct((Bp * T, F_PACK), jnp.float32),        # packed features
        jax.ShapeDtypeStruct((Bp, N_BANDS), jnp.float32),           # phase feature
    )

    specs, packed, phase = pl.pallas_call(
        audio_features_kernel,
        out_shape=out_shapes,
        grid_spec=pltpu.PrefetchScalarGridSpec(
            num_scalar_prefetch=0,
            grid=(nblk,),
            in_specs=[
                pl.BlockSpec((Bt * T, W), lambda i: (i, 0)),            # frames (f32)
                pl.BlockSpec((W, 2 * N_BANDS), lambda i: (0, 0)),       # fused filterbank
                pl.BlockSpec((N_BANDS, F_PACK), lambda i: (0, 0)),      # mag features
                pl.BlockSpec((N_BANDS, F_PACK), lambda i: (0, 0)),      # log-mag features
            ],
            out_specs=[
                pl.BlockSpec((Bt * T, 2 * N_BANDS), lambda i: (i, 0)),
                pl.BlockSpec((Bt * T, F_PACK), lambda i: (i, 0)),
                pl.BlockSpec((Bt, N_BANDS), lambda i: (i, 0)),
            ],
        ),
        compiler_params=pltpu.CompilerParams(
            dimension_semantics=("parallel",),
            vmem_limit_bytes=32 * 1024 * 1024),
    )(frames, basis, feat_mag, feat_dct)

    # ---- unpack back to the PyTorch (B, n_bands, T)-style conventions --------
    specs = specs[:B * T].reshape(B, T, 2 * N_BANDS)
    specs_t = jnp.transpose(specs, (0, 2, 1))                 # transpose while bf16
    real = specs_t[:, :N_BANDS, :].astype(jnp.float32)        # (B, NB, T)
    imag = specs_t[:, N_BANDS:, :].astype(jnp.float32)
    orig_spec = jax.lax.complex(real, imag)                   # complex64, like torch

    packed = packed[:B * T].reshape(B, T, F_PACK)
    loudness = jnp.sqrt(packed[..., COL_LOUD])[:, None, :]                            # (B,1,T)
    chroma = jnp.transpose(packed[..., COL_CHROMA:COL_CHROMA + N_CHROMA], (0, 2, 1))  # (B,12,T)
    mfcc = jnp.transpose(packed[..., COL_MFCC:COL_MFCC + N_MFCC], (0, 2, 1))          # (B,12,T)
    pooled = jnp.transpose(packed[..., COL_POOL:COL_POOL + 8], (0, 2, 1))             # (B,8,T)
    phase = phase[:B]                                                                 # (B,NB)

    # return order matches the PyTorch module
    return loudness, chroma, mfcc, pooled, phase, orig_spec


if __name__ == "__main__":
    key = jax.random.PRNGKey(0)
    x = jax.random.normal(key, (2, 1, N_SAMPLES), dtype=jnp.float32)
    params = make_params()

    fn = jax.jit(audio_features)
    loudness, chroma, mfcc, pooled, phase, orig_spec = fn(x, *params)
    outs = (loudness, chroma, mfcc, pooled, phase, orig_spec)
    for o in outs:
        jax.block_until_ready(o)

    assert loudness.shape == (2, 1, T)
    assert chroma.shape == (2, N_CHROMA, T)
    assert mfcc.shape == (2, N_MFCC, T)
    assert pooled.shape == (2, 8, T)
    assert phase.shape == (2, N_BANDS)
    assert orig_spec.shape == (2, N_BANDS, T) and jnp.iscomplexobj(orig_spec)
    for o in outs:
        assert bool(jnp.all(jnp.isfinite(o)))
    print("KERNEL_OK")
</pallas_src>

<mosaic_0001>
module attributes {stable_mosaic.version = 11 : i64} {
  func.func @audio_features_kernel(%arg0: i32, %arg1: memref<16x256xf32, #tpu.memory_space<vmem>>, %arg2: memref<256x512xbf16, #tpu.memory_space<vmem>>, %arg3: memref<256x128xbf16, #tpu.memory_space<vmem>>, %arg4: memref<256x128xbf16, #tpu.memory_space<vmem>>, %arg5: memref<16x512xbf16, #tpu.memory_space<vmem>>, %arg6: memref<16x128xf32, #tpu.memory_space<vmem>>, %arg7: memref<2x256xf32, #tpu.memory_space<vmem>>) attributes {dimension_semantics = [#tpu.dimension_semantics<parallel>], iteration_bounds = array<i64: 1>, scalar_prefetch = 0 : i64, scratch_operands = 0 : i64, tpu.core_type = #tpu.core_type<tc>, window_params = [{transform_indices = @transform_0, window_bounds = array<i64: 16, 256>}, {pipeline_mode = #tpu.pipeline_mode<synchronous>, transform_indices = @transform_1, window_bounds = array<i64: 256, 512>}, {pipeline_mode = #tpu.pipeline_mode<synchronous>, transform_indices = @transform_2, window_bounds = array<i64: 256, 128>}, {pipeline_mode = #tpu.pipeline_mode<synchronous>, transform_indices = @transform_3, window_bounds = array<i64: 256, 128>}, {transform_indices = @transform_4, window_bounds = array<i64: 16, 512>}, {transform_indices = @transform_5, window_bounds = array<i64: 16, 128>}, {transform_indices = @transform_6, window_bounds = array<i64: 2, 256>}]} {
    %c0 = arith.constant 0 : index
    %c0_0 = arith.constant 0 : index
    %0 = vector.load %arg1[%c0, %c0_0] : memref<16x256xf32, #tpu.memory_space<vmem>>, vector<16x256xf32>
    %1 = arith.truncf %0 : vector<16x256xf32> to vector<16x256xbf16>
    %c0_1 = arith.constant 0 : index
    %c0_2 = arith.constant 0 : index
    %2 = vector.load %arg2[%c0_1, %c0_2] : memref<256x512xbf16, #tpu.memory_space<vmem>>, vector<256x512xbf16>
    %cst = arith.constant dense<0.000000e+00> : vector<16x512xf32>
    %3 = tpu.matmul %1, %2, %cst {dimension_numbers = #tpu.dot_dimension_numbers<[1], [0], [0], [1], [0, 0, 1, 1], [], []>} : vector<16x256xbf16>, vector<256x512xbf16>, vector<16x512xf32> -> vector<16x512xf32>
    %4 = arith.truncf %3 : vector<16x512xf32> to vector<16x512xbf16>
    %c0_3 = arith.constant 0 : index
    %c0_4 = arith.constant 0 : index
    %5 = vector.load %arg5[%c0_3, %c0_4] : memref<16x512xbf16, #tpu.memory_space<vmem>>, vector<16x512xbf16>
    tpu.vector_store %arg5[%c0_3, %c0_4], %4 {strides = array<i32>} : memref<16x512xbf16, #tpu.memory_space<vmem>>, vector<16x512xbf16>,
    %6 = vector.extract_strided_slice %3 {offsets = [0, 0], sizes = [16, 256], strides = [1, 1]} : vector<16x512xf32> to vector<16x256xf32>
    %7 = vector.extract_strided_slice %3 {offsets = [0, 256], sizes = [16, 256], strides = [1, 1]} : vector<16x512xf32> to vector<16x256xf32>
    %8 = arith.mulf %6, %6 : vector<16x256xf32>
    %9 = arith.mulf %7, %7 : vector<16x256xf32>
    %10 = arith.addf %8, %9 : vector<16x256xf32>
    %11 = math.sqrt %10 : vector<16x256xf32>
    %cst_5 = arith.constant 1.000000e-16 : f32
    %12 = vector.broadcast %cst_5 : f32 to vector<16x256xf32>
    %13 = arith.addf %10, %12 : vector<16x256xf32>
    %14 = math.log %13 : vector<16x256xf32>
    %cst_6 = arith.constant 5.000000e-01 : f32
    %15 = vector.broadcast %cst_6 : f32 to vector<16x256xf32>
    %16 = arith.mulf %15, %14 : vector<16x256xf32>
    %cst_7 = arith.constant dense<0.000000e+00> : vector<16xf32>
    %17 = vector.multi_reduction <add>, %10, %cst_7 [1] : vector<16x256xf32> to vector<16xf32>
    %18 = vector.shape_cast %17 : vector<16xf32> to vector<16x1xf32>
    %19 = arith.truncf %11 : vector<16x256xf32> to vector<16x256xbf16>
    %c0_8 = arith.constant 0 : index
    %c0_9 = arith.constant 0 : index
    %20 = vector.load %arg3[%c0_8, %c0_9] : memref<256x128xbf16, #tpu.memory_space<vmem>>, vector<256x128xbf16>
    %cst_10 = arith.constant dense<0.000000e+00> : vector<16x128xf32>
    %21 = tpu.matmul %19, %20, %cst_10 {dimension_numbers = #tpu.dot_dimension_numbers<[1], [0], [0], [1], [0, 0, 1, 1], [], []>} : vector<16x256xbf16>, vector<256x128xbf16>, vector<16x128xf32> -> vector<16x128xf32>
    %22 = arith.truncf %16 : vector<16x256xf32> to vector<16x256xbf16>
    %c0_11 = arith.constant 0 : index
    %c0_12 = arith.constant 0 : index
    %23 = vector.load %arg4[%c0_11, %c0_12] : memref<256x128xbf16, #tpu.memory_space<vmem>>, vector<256x128xbf16>
    %cst_13 = arith.constant dense<0.000000e+00> : vector<16x128xf32>
    %24 = tpu.matmul %22, %23, %cst_13 {dimension_numbers = #tpu.dot_dimension_numbers<[1], [0], [0], [1], [0, 0, 1, 1], [], []>} : vector<16x256xbf16>, vector<256x128xbf16>, vector<16x128xf32> -> vector<16x128xf32>
    %25 = arith.addf %21, %24 : vector<16x128xf32>
    %26 = tpu.iota {dimensions = array<i32: 1>} : vector<16x128xi32>
    %c0_i32 = arith.constant 0 : i32
    %27 = vector.broadcast %c0_i32 : i32 to vector<16x128xi32>
    %28 = arith.cmpi eq, %26, %27 : vector<16x128xi32>
    %29 = vector.shape_cast %18 : vector<16x1xf32> to vector<16x1xf32>
    %30 = vector.broadcast %29 : vector<16x1xf32> to vector<16x128xf32>
    %31 = arith.select %28, %30, %25 : vector<16x128xi1>, vector<16x128xf32>
    %c0_14 = arith.constant 0 : index
    %c0_15 = arith.constant 0 : index
    %32 = vector.load %arg6[%c0_14, %c0_15] : memref<16x128xf32, #tpu.memory_space<vmem>>, vector<16x128xf32>
    tpu.vector_store %arg6[%c0_14, %c0_15], %31 {strides = array<i32>} : memref<16x128xf32, #tpu.memory_space<vmem>>, vector<16x128xf32>,
    %33 = vector.shape_cast %6 : vector<16x256xf32> to vector<2x8x256xf32>
    %34 = vector.shape_cast %7 : vector<16x256xf32> to vector<2x8x256xf32>
    %35 = vector.shape_cast %10 : vector<16x256xf32> to vector<2x8x256xf32>
    %36 = vector.extract_strided_slice %34 {offsets = [0, 1, 0], sizes = [2, 7, 256], strides = [1, 1, 1]} : vector<2x8x256xf32> to vector<2x7x256xf32>
    %37 = vector.extract_strided_slice %33 {offsets = [0, 0, 0], sizes = [2, 7, 256], strides = [1, 1, 1]} : vector<2x8x256xf32> to vector<2x7x256xf32>
    %38 = arith.mulf %36, %37 : vector<2x7x256xf32>
    %39 = vector.extract_strided_slice %33 {offsets = [0, 1, 0], sizes = [2, 7, 256], strides = [1, 1, 1]} : vector<2x8x256xf32> to vector<2x7x256xf32>
    %40 = vector.extract_strided_slice %34 {offsets = [0, 0, 0], sizes = [2, 7, 256], strides = [1, 1, 1]} : vector<2x8x256xf32> to vector<2x7x256xf32>
    %41 = arith.mulf %39, %40 : vector<2x7x256xf32>
    %42 = arith.subf %38, %41 : vector<2x7x256xf32>
    %43 = vector.extract_strided_slice %35 {offsets = [0, 1, 0], sizes = [2, 7, 256], strides = [1, 1, 1]} : vector<2x8x256xf32> to vector<2x7x256xf32>
    %44 = vector.extract_strided_slice %35 {offsets = [0, 0, 0], sizes = [2, 7, 256], strides = [1, 1, 1]} : vector<2x8x256xf32> to vector<2x7x256xf32>
    %45 = arith.mulf %43, %44 : vector<2x7x256xf32>
    %cst_16 = arith.constant 1.000000e-18 : f32
    %46 = vector.broadcast %cst_16 : f32 to vector<2x7x256xf32>
    %47 = arith.maximumf %45, %46 : vector<2x7x256xf32>
    %48 = math.rsqrt %47 : vector<2x7x256xf32>
    %49 = arith.mulf %42, %48 : vector<2x7x256xf32>
    %cst_17 = arith.constant dense<0.000000e+00> : vector<2x256xf32>
    %50 = vector.multi_reduction <add>, %49, %cst_17 [1] : vector<2x7x256xf32> to vector<2x256xf32>
    %cst_18 = arith.constant 7.000000e+00 : f32
    %51 = vector.broadcast %cst_18 : f32 to vector<2x256xf32>
    %52 = arith.divf %50, %51 : vector<2x256xf32>
    %c0_19 = arith.constant 0 : index
    %c0_20 = arith.constant 0 : index
    %53 = vector.load %arg7[%c0_19, %c0_20] : memref<2x256xf32, #tpu.memory_space<vmem>>, vector<2x256xf32>
    tpu.vector_store %arg7[%c0_19, %c0_20], %52 {strides = array<i32>} : memref<2x256xf32, #tpu.memory_space<vmem>>, vector<2x256xf32>,
    return
  }
  func.func @transform_0(%arg0: i32) -> (i32, i32) {
    %c0_i32 = arith.constant 0 : i32
    %c0_i32_0 = arith.constant 0 : i32
    return %arg0, %c0_i32 : i32, i32
  }
  func.func @transform_1(%arg0: i32) -> (i32, i32) {
    %c0_i32 = arith.constant 0 : i32
    %c0_i32_0 = arith.constant 0 : i32
    %c0_i32_1 = arith.constant 0 : i32
    return %c0_i32, %c0_i32_0 : i32, i32
  }
  func.func @transform_2(%arg0: i32) -> (i32, i32) {
    %c0_i32 = arith.constant 0 : i32
    %c0_i32_0 = arith.constant 0 : i32
    %c0_i32_1 = arith.constant 0 : i32
    return %c0_i32, %c0_i32_0 : i32, i32
  }
  func.func @transform_3(%arg0: i32) -> (i32, i32) {
    %c0_i32 = arith.constant 0 : i32
    %c0_i32_0 = arith.constant 0 : i32
    %c0_i32_1 = arith.constant 0 : i32
    return %c0_i32, %c0_i32_0 : i32, i32
  }
  func.func @transform_4(%arg0: i32) -> (i32, i32) {
    %c0_i32 = arith.constant 0 : i32
    %c0_i32_0 = arith.constant 0 : i32
    return %arg0, %c0_i32 : i32, i32
  }
  func.func @transform_5(%arg0: i32) -> (i32, i32) {
    %c0_i32 = arith.constant 0 : i32
    %c0_i32_0 = arith.constant 0 : i32
    return %arg0, %c0_i32 : i32, i32
  }
  func.func @transform_6(%arg0: i32) -> (i32, i32) {
    %c0_i32 = arith.constant 0 : i32
    %c0_i32_0 = arith.constant 0 : i32
    return %arg0, %c0_i32 : i32, i32
  }
}

</mosaic_0001>

<llo_original>
// kernel: custom-call
$region0: #{custom-call}
  %s0 = inlined_call_operand.vmem [shape: f32[2,256,8], index: 0, kind: input, shape index: {}]
  %s1 = inlined_call_operand.vmem [shape: f32[2,256,8], index: 1, kind: input, shape index: {}]
  %s2 = inlined_call_operand.hbm [shape: c64[2,256,8], index: 2, kind: output, shape index: {}]
  %s3 = scalar_lea.hbm %s2, 512
  $region1: #{custom-call} parent=0
    #allocation0 [shape = 's32[1]{0}', space=sflag, size = 0x4, scoped, tag = 'scoped memory for custom-call']
    %4 = vsyncpa [#allocation0], 0
    %s5 = sshll.u32 %s0, 4
    %s6 = int_to_ptr.vmem [resolvable:$true] %s5
    %8 = dma.vmem_to_hbm [thread:$0]  %s6, 512, %s2, [#allocation0]
    %9 = dma.done [#allocation0], 512
    %10 = vsyncpa [#allocation0], 1
  $region2: #{custom-call} parent=0
    #allocation1 [shape = 's32[1]{0}', space=sflag, size = 0x4, scoped, tag = 'scoped memory for custom-call']
    %11 = vsyncpa [#allocation1], 0
    %s12 = sshll.u32 %s1, 4
    %s13 = int_to_ptr.vmem [resolvable:$true] %s12
    %15 = dma.vmem_to_hbm [thread:$0]  %s13, 512, %s3, [#allocation1]
    %16 = dma.done [#allocation1], 512
    %17 = vsyncpa [#allocation1], 1

// kernel: audio_features.1
$region0: #{audio_features.1}
  #allocation0 [shape = 'u32[]', space=smem, size = 0x4, offset = 0x4, fixed_abs, tag = 'smem constant byte address 0x4 - core index']
  #allocation1 [shape = 'u32[144,128]{1,0:T(1,128)}', space=vmem, size = 0x12000, scoped, tag = 'internal scratch']
  %s0 = inlined_call_operand.vmem [shape: f32[16,256], index: 0, kind: input, shape index: {}]
  %s1 = inlined_call_operand.hbm [shape: bf16[256,512], index: 1, kind: input, shape index: {}]
  %s2 = inlined_call_operand.vmem [shape: bf16[256,128], index: 2, kind: input, shape index: {}]
  %s3 = inlined_call_operand.hbm [shape: bf16[256,128], index: 3, kind: input, shape index: {}]
  %s4 = inlined_call_operand.vmem [shape: bf16[16,512], index: 4, kind: output, shape index: {0}]
  %s5 = inlined_call_operand.vmem [shape: f32[16,128], index: 5, kind: output, shape index: {1}]
  %s6 = inlined_call_operand.hbm [shape: f32[2,256], index: 6, kind: output, shape index: {2}]
  %7 = xla_tuple %s4, %s5, %s6
  %s8 = sld [smem:[#allocation0]]
  $region50: #{audio_features.1} parent=0
    _
  %s10 = ssub.s32 1, %s8
  %s11 = scalar_select 0, %s10, %s8
  $region1: #{audio_features.1} parent=0
    #allocation2 [shape = 'u8[262144]{0}', space=vmem, size = 0x40000, scoped, tag = 'input window, operand 1, single buffered']
    #allocation3 [shape = 's32[1]{0}', space=sflag, size = 0x4, scoped, tag = 'scoped memory for audio_features.1']
    #allocation4 [shape = 's32[1]{0}', space=sflag, size = 0x4, scoped, tag = 'scoped memory for audio_features.1']
    #allocation5 [shape = 'u8[65536]{0}', space=vmem, size = 0x10000, scoped, tag = 'input window, operand 3, single buffered']
    #allocation6 [shape = 's32[1]{0}', space=sflag, size = 0x4, scoped, tag = 'scoped memory for audio_features.1']
    #allocation7 [shape = 'u8[2048]{0}', space=vmem, size = 0x800, scoped, tag = 'output window, operand 2, single buffered']
    %12 = vsyncpa [#allocation3], 0
    %13 = vsyncpa [#allocation6], 0
    %14 = vsyncpa [#allocation4], 0
    // Predicated region
    $region2: #{audio_features.1} parent=1 // pred_check
      _
    $region3: #{audio_features.1} parent=1 // pred_check_branch
      %16 = sbr.rel (0) target = $region5
    $region4: #{audio_features.1} parent=1 // pred_region
      _
    $region5: #{audio_features.1} parent=1 // pred_fallthru
      _
    // Predicated region
    $region6: #{audio_features.1} parent=1 // pred_check
      _
    $region7: #{audio_features.1} parent=1 // pred_check_branch
      %18 = sbr.rel (0) target = $region9
    $region8: #{audio_features.1} parent=1 // pred_region
      %s20 = ssub.s32 8192, 8192
      %21 = vsyncadd [#allocation3], %s20
      %s22 = sshll.u32 [#allocation2], 4
      %s23 = int_to_ptr.vmem [resolvable:$true] %s22
      %28 = dma.hbm_to_vmem [thread:$0]  %s1, 8192, %s23, [#allocation3], 256, 256, 16
    $region9: #{audio_features.1} parent=1 // pred_fallthru
      _
    // Predicated region
    $region10: #{audio_features.1} parent=1 // pred_check
      _
    $region11: #{audio_features.1} parent=1 // pred_check_branch
      %30 = sbr.rel (0) target = $region13
    $region12: #{audio_features.1} parent=1 // pred_region
      _
    $region13: #{audio_features.1} parent=1 // pred_fallthru
      _
    // Predicated region
    $region14: #{audio_features.1} parent=1 // pred_check
      _
    $region15: #{audio_features.1} parent=1 // pred_check_branch
      %32 = sbr.rel (0) target = $region17
    $region16: #{audio_features.1} parent=1 // pred_region
      %s34 = ssub.s32 2048, 2048
      %35 = vsyncadd [#allocation6], %s34
      %s36 = sshll.u32 [#allocation5], 4
      %s37 = int_to_ptr.vmem [resolvable:$true] %s36
      %42 = dma.hbm_to_vmem [thread:$0]  %s3, 2048, %s37, [#allocation6], 64, 64, 4
    $region17: #{audio_features.1} parent=1 // pred_fallthru
      _
    // Predicated region
    $region18: #{audio_features.1} parent=1 // pred_check
      _
    $region19: #{audio_features.1} parent=1 // pred_check_branch
      %44 = sbr.rel (0) target = $region21
    $region20: #{audio_features.1} parent=1 // pred_region
      %45 = dma.done [#allocation3], 8192
    $region21: #{audio_features.1} parent=1 // pred_fallthru
      _
    // Predicated region
    $region22: #{audio_features.1} parent=1 // pred_check
      _
    $region23: #{audio_features.1} parent=1 // pred_check_branch
      %47 = sbr.rel (0) target = $region25
    $region24: #{audio_features.1} parent=1 // pred_region
      %48 = dma.done [#allocation6], 2048
    $region25: #{audio_features.1} parent=1 // pred_fallthru
      _
    %v50 = vld [vmem:[%s0] sm:$0xff]
    %v51 = vld [vmem:[%s0 + $0x8] sm:$0xff]
    %v52 = vld [vmem:[%s0 + $0x10] sm:$0xff]
    %v53 = vld [vmem:[%s0 + $0x18] sm:$0xff]
    %v54 = vpack.c.bf16 %v52, %v50
    %v55 = vpack.c.bf16 %v53, %v51
    %v56 = vld [vmem:[#allocation2] sm:$0xff]
    %v57 = vld [vmem:[#allocation2 + $0x8] sm:$0xff]
    %v58 = vld [vmem:[#allocation2 + $0x10] sm:$0xff]
    %v59 = vld [vmem:[#allocation2 + $0x18] sm:$0xff]
    %v60 = vld [vmem:[#allocation2 + $0x20] sm:$0xff]
    %v61 = vld [vmem:[#allocation2 + $0x28] sm:$0xff]
    %v62 = vld [vmem:[#allocation2 + $0x30] sm:$0xff]
    %v63 = vld [vmem:[#allocation2 + $0x38] sm:$0xff]
    %v64 = vld [vmem:[#allocation2 + $0x40] sm:$0xff]
    %v65 = vld [vmem:[#allocation2 + $0x48] sm:$0xff]
    %v66 = vld [vmem:[#allocation2 + $0x50] sm:$0xff]
    %v67 = vld [vmem:[#allocation2 + $0x58] sm:$0xff]
    %v68 = vld [vmem:[#allocation2 + $0x60] sm:$0xff]
    %v69 = vld [vmem:[#allocation2 + $0x68] sm:$0xff]
    %v70 = vld [vmem:[#allocation2 + $0x70] sm:$0xff]
    %v71 = vld [vmem:[#allocation2 + $0x78] sm:$0xff]
    %v72 = vld [vmem:[#allocation2 + $0x80] sm:$0xff]
    %v73 = vld [vmem:[#allocation2 + $0x88] sm:$0xff]
    %v74 = vld [vmem:[#allocation2 + $0x90] sm:$0xff]
    %v75 = vld [vmem:[#allocation2 + $0x98] sm:$0xff]
    %v76 = vld [vmem:[#allocation2 + $0xa0] sm:$0xff]
    %v77 = vld [vmem:[#allocation2 + $0xa8] sm:$0xff]
    %v78 = vld [vmem:[#allocation2 + $0xb0] sm:$0xff]
    %v79 = vld [vmem:[#allocation2 + $0xb8] sm:$0xff]
    %v80 = vld [vmem:[#allocation2 + $0xc0] sm:$0xff]
    %v81 = vld [vmem:[#allocation2 + $0xc8] sm:$0xff]
    %v82 = vld [vmem:[#allocation2 + $0xd0] sm:$0xff]
    %v83 = vld [vmem:[#allocation2 + $0xd8] sm:$0xff]
    %v84 = vld [vmem:[#allocation2 + $0xe0] sm:$0xff]
    %v85 = vld [vmem:[#allocation2 + $0xe8] sm:$0xff]
    %v86 = vld [vmem:[#allocation2 + $0xf0] sm:$0xff]
    %v87 = vld [vmem:[#allocation2 + $0xf8] sm:$0xff]
    %v88 = vld [vmem:[#allocation2 + $0x100] sm:$0xff]
    %v89 = vld [vmem:[#allocation2 + $0x108] sm:$0xff]
    %v90 = vld [vmem:[#allocation2 + $0x110] sm:$0xff]
    %v91 = vld [vmem:[#allocation2 + $0x118] sm:$0xff]
    %v92 = vld [vmem:[#allocation2 + $0x120] sm:$0xff]
    %v93 = vld [vmem:[#allocation2 + $0x128] sm:$0xff]
    %v94 = vld [vmem:[#allocation2 + $0x130] sm:$0xff]
    %v95 = vld [vmem:[#allocation2 + $0x138] sm:$0xff]
    %v96 = vld [vmem:[#allocation2 + $0x140] sm:$0xff]
    %v97 = vld [vmem:[#allocation2 + $0x148] sm:$0xff]
    %v98 = vld [vmem:[#allocation2 + $0x150] sm:$0xff]
    %v99 = vld [vmem:[#allocation2 + $0x158] sm:$0xff]
    %v100 = vld [vmem:[#allocation2 + $0x160] sm:$0xff]
    %v101 = vld [vmem:[#allocation2 + $0x168] sm:$0xff]
    %v102 = vld [vmem:[#allocation2 + $0x170] sm:$0xff]
    %v103 = vld [vmem:[#allocation2 + $0x178] sm:$0xff]
    %v104 = vld [vmem:[#allocation2 + $0x180] sm:$0xff]
    %v105 = vld [vmem:[#allocation2 + $0x188] sm:$0xff]
    %v106 = vld [vmem:[#allocation2 + $0x190] sm:$0xff]
    %v107 = vld [vmem:[#allocation2 + $0x198] sm:$0xff]
    %v108 = vld [vmem:[#allocation2 + $0x1a0] sm:$0xff]
    %v109 = vld [vmem:[#allocation2 + $0x1a8] sm:$0xff]
    %v110 = vld [vmem:[#allocation2 + $0x1b0] sm:$0xff]
    %v111 = vld [vmem:[#allocation2 + $0x1b8] sm:$0xff]
    %v112 = vld [vmem:[#allocation2 + $0x1c0] sm:$0xff]
    %v113 = vld [vmem:[#allocation2 + $0x1c8] sm:$0xff]
    %v114 = vld [vmem:[#allocation2 + $0x1d0] sm:$0xff]
    %v115 = vld [vmem:[#allocation2 + $0x1d8] sm:$0xff]
    %v116 = vld [vmem:[#allocation2 + $0x1e0] sm:$0xff]
    %v117 = vld [vmem:[#allocation2 + $0x1e8] sm:$0xff]
    %v118 = vld [vmem:[#allocation2 + $0x1f0] sm:$0xff]
    %v119 = vld [vmem:[#allocation2 + $0x1f8] sm:$0xff]
    %v184 = vunpack.c.l.b16 %v56
    %v185 = vunpack.c.h.b16 %v56
    %v186 = vunpack.c.l.b16 %v57
    %v187 = vunpack.c.h.b16 %v57
    %v188 = vunpack.c.l.b16 %v58
    %v189 = vunpack.c.h.b16 %v58
    %v190 = vunpack.c.l.b16 %v59
    %v191 = vunpack.c.h.b16 %v59
    %v192 = vunpack.c.l.b16 %v60
    %v193 = vunpack.c.h.b16 %v60
    %v194 = vunpack.c.l.b16 %v61
    %v195 = vunpack.c.h.b16 %v61
    %v196 = vunpack.c.l.b16 %v62
    %v197 = vunpack.c.h.b16 %v62
    %v198 = vunpack.c.l.b16 %v63
    %v199 = vunpack.c.h.b16 %v63
    %v200 = vunpack.c.l.b16 %v64
    %v201 = vunpack.c.h.b16 %v64
    %v202 = vunpack.c.l.b16 %v65
    %v203 = vunpack.c.h.b16 %v65
    %v204 = vunpack.c.l.b16 %v66
    %v205 = vunpack.c.h.b16 %v66
    %v206 = vunpack.c.l.b16 %v67
    %v207 = vunpack.c.h.b16 %v67
    %v208 = vunpack.c.l.b16 %v68
    %v209 = vunpack.c.h.b16 %v68
    %v210 = vunpack.c.l.b16 %v69
    %v211 = vunpack.c.h.b16 %v69
    %v212 = vunpack.c.l.b16 %v70
    %v213 = vunpack.c.h.b16 %v70
    %v214 = vunpack.c.l.b16 %v71
    %v215 = vunpack.c.h.b16 %v71
    %v216 = vunpack.c.l.b16 %v72
    %v217 = vunpack.c.h.b16 %v72
    %v218 = vunpack.c.l.b16 %v73
    %v219 = vunpack.c.h.b16 %v73
    %v220 = vunpack.c.l.b16 %v74
    %v221 = vunpack.c.h.b16 %v74
    %v222 = vunpack.c.l.b16 %v75
    %v223 = vunpack.c.h.b16 %v75
    %v224 = vunpack.c.l.b16 %v76
    %v225 = vunpack.c.h.b16 %v76
    %v226 = vunpack.c.l.b16 %v77
    %v227 = vunpack.c.h.b16 %v77
    %v228 = vunpack.c.l.b16 %v78
    %v229 = vunpack.c.h.b16 %v78
    %v230 = vunpack.c.l.b16 %v79
    %v231 = vunpack.c.h.b16 %v79
    %v232 = vunpack.c.l.b16 %v80
    %v233 = vunpack.c.h.b16 %v80
    %v234 = vunpack.c.l.b16 %v81
    %v235 = vunpack.c.h.b16 %v81
    %v236 = vunpack.c.l.b16 %v82
    %v237 = vunpack.c.h.b16 %v82
    %v238 = vunpack.c.l.b16 %v83
    %v239 = vunpack.c.h.b16 %v83
    %v240 = vunpack.c.l.b16 %v84
    %v241 = vunpack.c.h.b16 %v84
    %v242 = vunpack.c.l.b16 %v85
    %v243 = vunpack.c.h.b16 %v85
    %v244 = vunpack.c.l.b16 %v86
    %v245 = vunpack.c.h.b16 %v86
    %v246 = vunpack.c.l.b16 %v87
    %v247 = vunpack.c.h.b16 %v87
    %v248 = vunpack.c.l.b16 %v88
    %v249 = vunpack.c.h.b16 %v88
    %v250 = vunpack.c.l.b16 %v89
    %v251 = vunpack.c.h.b16 %v89
    %v252 = vunpack.c.l.b16 %v90
    %v253 = vunpack.c.h.b16 %v90
    %v254 = vunpack.c.l.b16 %v91
    %v255 = vunpack.c.h.b16 %v91
    %v256 = vunpack.c.l.b16 %v92
    %v257 = vunpack.c.h.b16 %v92
    %v258 = vunpack.c.l.b16 %v93
    %v259 = vunpack.c.h.b16 %v93
    %v260 = vunpack.c.l.b16 %v94
    %v261 = vunpack.c.h.b16 %v94
    %v262 = vunpack.c.l.b16 %v95
    %v263 = vunpack.c.h.b16 %v95
    %v264 = vunpack.c.l.b16 %v96
    %v265 = vunpack.c.h.b16 %v96
    %v266 = vunpack.c.l.b16 %v97
    %v267 = vunpack.c.h.b16 %v97
    %v268 = vunpack.c.l.b16 %v98
    %v269 = vunpack.c.h.b16 %v98
    %v270 = vunpack.c.l.b16 %v99
    %v271 = vunpack.c.h.b16 %v99
    %v272 = vunpack.c.l.b16 %v100
    %v273 = vunpack.c.h.b16 %v100
    %v274 = vunpack.c.l.b16 %v101
    %v275 = vunpack.c.h.b16 %v101
    %v276 = vunpack.c.l.b16 %v102
    %v277 = vunpack.c.h.b16 %v102
    %v278 = vunpack.c.l.b16 %v103
    %v279 = vunpack.c.h.b16 %v103
    %v280 = vunpack.c.l.b16 %v104
    %v281 = vunpack.c.h.b16 %v104
    %v282 = vunpack.c.l.b16 %v105
    %v283 = vunpack.c.h.b16 %v105
    %v284 = vunpack.c.l.b16 %v106
    %v285 = vunpack.c.h.b16 %v106
    %v286 = vunpack.c.l.b16 %v107
    %v287 = vunpack.c.h.b16 %v107
    %v288 = vunpack.c.l.b16 %v108
    %v289 = vunpack.c.h.b16 %v108
    %v290 = vunpack.c.l.b16 %v109
    %v291 = vunpack.c.h.b16 %v109
    %v292 = vunpack.c.l.b16 %v110
    %v293 = vunpack.c.h.b16 %v110
    %v294 = vunpack.c.l.b16 %v111
    %v295 = vunpack.c.h.b16 %v111
    %v296 = vunpack.c.l.b16 %v112
    %v297 = vunpack.c.h.b16 %v112
    %v298 = vunpack.c.l.b16 %v113
    %v299 = vunpack.c.h.b16 %v113
    %v300 = vunpack.c.l.b16 %v114
    %v301 = vunpack.c.h.b16 %v114
    %v302 = vunpack.c.l.b16 %v115
    %v303 = vunpack.c.h.b16 %v115
    %v304 = vunpack.c.l.b16 %v116
    %v305 = vunpack.c.h.b16 %v116
    %v306 = vunpack.c.l.b16 %v117
    %v307 = vunpack.c.h.b16 %v117
    %v308 = vunpack.c.l.b16 %v118
    %v309 = vunpack.c.h.b16 %v118
    %v310 = vunpack.c.l.b16 %v119
    %v311 = vunpack.c.h.b16 %v119
    %v312 = vpack.c.b16 %v188, %v184
    %v313 = vpack.c.b16 %v189, %v185
    %v314 = vpack.c.b16 %v190, %v186
    %v315 = vpack.c.b16 %v191, %v187
    %v316 = vpack.c.b16 %v196, %v192
    %v317 = vpack.c.b16 %v197, %v193
    %v318 = vpack.c.b16 %v198, %v194
    %v319 = vpack.c.b16 %v199, %v195
    %v320 = vpack.c.b16 %v204, %v200
    %v321 = vpack.c.b16 %v205, %v201
    %v322 = vpack.c.b16 %v206, %v202
    %v323 = vpack.c.b16 %v207, %v203
    %v324 = vpack.c.b16 %v212, %v208
    %v325 = vpack.c.b16 %v213, %v209
    %v326 = vpack.c.b16 %v214, %v210
    %v327 = vpack.c.b16 %v215, %v211
    %v328 = vpack.c.b16 %v220, %v216
    %v329 = vpack.c.b16 %v221, %v217
    %v330 = vpack.c.b16 %v222, %v218
    %v331 = vpack.c.b16 %v223, %v219
    %v332 = vpack.c.b16 %v228, %v224
    %v333 = vpack.c.b16 %v229, %v225
    %v334 = vpack.c.b16 %v230, %v226
    %v335 = vpack.c.b16 %v231, %v227
    %v336 = vpack.c.b16 %v236, %v232
    %v337 = vpack.c.b16 %v237, %v233
    %v338 = vpack.c.b16 %v238, %v234
    %v339 = vpack.c.b16 %v239, %v235
    %v340 = vpack.c.b16 %v244, %v240
    %v341 = vpack.c.b16 %v245, %v241
    %v342 = vpack.c.b16 %v246, %v242
    %v343 = vpack.c.b16 %v247, %v243
    %v344 = vpack.c.b16 %v252, %v248
    %v345 = vpack.c.b16 %v253, %v249
    %v346 = vpack.c.b16 %v254, %v250
    %v347 = vpack.c.b16 %v255, %v251
    %v348 = vpack.c.b16 %v260, %v256
    %v349 = vpack.c.b16 %v261, %v257
    %v350 = vpack.c.b16 %v262, %v258
    %v351 = vpack.c.b16 %v263, %v259
    %v352 = vpack.c.b16 %v268, %v264
    %v353 = vpack.c.b16 %v269, %v265
    %v354 = vpack.c.b16 %v270, %v266
    %v355 = vpack.c.b16 %v271, %v267
    %v356 = vpack.c.b16 %v276, %v272
    %v357 = vpack.c.b16 %v277, %v273
    %v358 = vpack.c.b16 %v278, %v274
    %v359 = vpack.c.b16 %v279, %v275
    %v360 = vpack.c.b16 %v284, %v280
    %v361 = vpack.c.b16 %v285, %v281
    %v362 = vpack.c.b16 %v286, %v282
    %v363 = vpack.c.b16 %v287, %v283
    %v364 = vpack.c.b16 %v292, %v288
    %v365 = vpack.c.b16 %v293, %v289
    %v366 = vpack.c.b16 %v294, %v290
    %v367 = vpack.c.b16 %v295, %v291
    %v368 = vpack.c.b16 %v300, %v296
    %v369 = vpack.c.b16 %v301, %v297
    %v370 = vpack.c.b16 %v302, %v298
    %v371 = vpack.c.b16 %v303, %v299
    %v372 = vpack.c.b16 %v308, %v304
    %v373 = vpack.c.b16 %v309, %v305
    %v374 = vpack.c.b16 %v310, %v306
    %v375 = vpack.c.b16 %v311, %v307
    %440 = vmatprep.subr.bf16.mxu0 %v341
    %441 = vmatpush1.bf16.msra.mxu0 %v340
    %442 = vmatprep.subr.bf16.mxu0 %v337
    %443 = vmatpush1.bf16.msra.mxu0 %v336
    %444 = vmatprep.subr.bf16.mxu0 %v333
    %445 = vmatpush1.bf16.msra.mxu0 %v332
    %446 = vmatprep.subr.bf16.mxu0 %v329
    %447 = vmatpush1.bf16.msra.mxu0 %v328
    %448 = vmatprep.subr.bf16.mxu0 %v325
    %449 = vmatpush1.bf16.msra.mxu0 %v324
    %450 = vmatprep.subr.bf16.mxu0 %v321
    %451 = vmatpush1.bf16.msra.mxu0 %v320
    %452 = vmatprep.subr.bf16.mxu0 %v317
    %453 = vmatpush1.bf16.msra.mxu0 %v316
    %454 = vmatprep.subr.bf16.mxu0 %v313
    %455 = vmatpush1.bf16.msra.mxu0 %v312
    %456 = vmatprep.subr.bf16.mxu0 %v373
    %457 = vmatpush2.bf16.msra.mxu0 %v372
    %458 = vmatprep.subr.bf16.mxu0 %v369
    %459 = vmatpush2.bf16.msra.mxu0 %v368
    %460 = vmatprep.subr.bf16.mxu0 %v365
    %461 = vmatpush2.bf16.msra.mxu0 %v364
    %462 = vmatprep.subr.bf16.mxu0 %v361
    %463 = vmatpush2.bf16.msra.mxu0 %v360
    %464 = vmatprep.subr.bf16.mxu0 %v357
    %465 = vmatpush2.bf16.msra.mxu0 %v356
    %466 = vmatprep.subr.bf16.mxu0 %v353
    %467 = vmatpush2.bf16.msra.mxu0 %v352
    %468 = vmatprep.subr.bf16.mxu0 %v349
    %469 = vmatpush2.bf16.msra.mxu0 %v348
    %470 = vmatprep.subr.bf16.mxu0 %v345
    %471 = vmatpush2.bf16.msra.mxu0 %v344
    %472 = vmatprep.mubr.bf16.mxu0 %v55
    %473 = vmatmul.mubr.bf16.gmra.mxu0 %v54
    %v474 = vpop.f32.mrf.mxu0
    %v475 = vadd.f32 0.0, %v474
    %v476 = vpop.f32.mrf.mxu0
    %v477 = vadd.f32 0.0, %v476
    %v478 = vpop.f32.mrf.mxu0
    %v479 = vadd.f32 0.0, %v478
    %v480 = vpop.f32.mrf.mxu0
    %v481 = vadd.f32 0.0, %v480
    %482 = vdwg.mxu0
    %483 = vmatprep.subr.bf16.mxu0 %v343
    %484 = vmatpush1.bf16.msra.mxu0 %v342
    %485 = vmatprep.subr.bf16.mxu0 %v339
    %486 = vmatpush1.bf16.msra.mxu0 %v338
    %487 = vmatprep.subr.bf16.mxu0 %v335
    %488 = vmatpush1.bf16.msra.mxu0 %v334
    %489 = vmatprep.subr.bf16.mxu0 %v331
    %490 = vmatpush1.bf16.msra.mxu0 %v330
    %491 = vmatprep.subr.bf16.mxu0 %v327
    %492 = vmatpush1.bf16.msra.mxu0 %v326
    %493 = vmatprep.subr.bf16.mxu0 %v323
    %494 = vmatpush1.bf16.msra.mxu0 %v322
    %495 = vmatprep.subr.bf16.mxu0 %v319
    %496 = vmatpush1.bf16.msra.mxu0 %v318
    %497 = vmatprep.subr.bf16.mxu0 %v315
    %498 = vmatpush1.bf16.msra.mxu0 %v314
    %499 = vmatprep.subr.bf16.mxu0 %v375
    %500 = vmatpush2.bf16.msra.mxu0 %v374
    %501 = vmatprep.subr.bf16.mxu0 %v371
    %502 = vmatpush2.bf16.msra.mxu0 %v370
    %503 = vmatprep.subr.bf16.mxu0 %v367
    %504 = vmatpush2.bf16.msra.mxu0 %v366
    %505 = vmatprep.subr.bf16.mxu0 %v363
    %506 = vmatpush2.bf16.msra.mxu0 %v362
    %507 = vmatprep.subr.bf16.mxu0 %v359
    %508 = vmatpush2.bf16.msra.mxu0 %v358
    %509 = vmatprep.subr.bf16.mxu0 %v355
    %510 = vmatpush2.bf16.msra.mxu0 %v354
    %511 = vmatprep.subr.bf16.mxu0 %v351
    %512 = vmatpush2.bf16.msra.mxu0 %v350
    %513 = vmatprep.subr.bf16.mxu0 %v347
    %514 = vmatpush2.bf16.msra.mxu0 %v346
    %515 = vmatprep.mubr.bf16.mxu0 %v55
    %516 = vmatmul.mubr.bf16.gmra.mxu0 %v54
    %v517 = vpop.f32.mrf.mxu0
    %v518 = vadd.f32 0.0, %v517
    %v519 = vpop.f32.mrf.mxu0
    %v520 = vadd.f32 0.0, %v519
    %v521 = vpop.f32.mrf.mxu0
    %v522 = vadd.f32 0.0, %v521
    %v523 = vpop.f32.mrf.mxu0
    %v524 = vadd.f32 0.0, %v523
    %525 = vdwg.mxu0
    %v526 = vpack.c.bf16 %v479, %v475
    %v527 = vpack.c.bf16 %v481, %v477
    %v528 = vpack.c.bf16 %v522, %v518
    %v529 = vpack.c.bf16 %v524, %v520
    %v534 = vunpack.c.l.b16 %v526
    %v535 = vunpack.c.l.b16 %v527
    %v536 = vunpack.c.l.b16 %v528
    %v537 = vunpack.c.l.b16 %v529
    %v538 = vunpack.c.h.b16 %v526
    %v539 = vunpack.c.h.b16 %v527
    %v540 = vunpack.c.h.b16 %v528
    %v541 = vunpack.c.h.b16 %v529
    %v542 = vpack.c.b16 %v535, %v534
    %v543 = vpack.c.b16 %v537, %v536
    %v544 = vpack.c.b16 %v539, %v538
    %v545 = vpack.c.b16 %v541, %v540
    %550 = vst [vmem:[%s4] sm:$0xff] %v542
    %551 = vst [vmem:[%s4 + $0x8] sm:$0xff] %v543
    %552 = vst [vmem:[%s4 + $0x10] sm:$0xff] %v544
    %553 = vst [vmem:[%s4 + $0x18] sm:$0xff] %v545
    %v554 = vmul.f32 %v475, %v475
    %v555 = vmul.f32 %v477, %v477
    %v556 = vmul.f32 %v479, %v479
    %v557 = vmul.f32 %v481, %v481
    %v558 = vmul.f32 %v518, %v518
    %v559 = vmul.f32 %v520, %v520
    %v560 = vmul.f32 %v522, %v522
    %v561 = vmul.f32 %v524, %v524
    %v562 = vadd.f32 %v554, %v558
    %v563 = vadd.f32 %v555, %v559
    %v564 = vadd.f32 %v556, %v560
    %v565 = vadd.f32 %v557, %v561
    %v566 = vrsqrt.pop %v562
    %v567 = vmul.f32 %v562, %v566
    %vm568 = vcmp.eq.f32.partialorder %v562, inf
    %v569 = vsel %vm568, %v562, %v567
    %vm570 = vcmp.eq.f32.partialorder %v562, 0.0
    %v571 = vand.u32 %v562, 2147483648
    %v572 = vsel %vm570, %v571, %v569
    %v573 = vrsqrt.pop %v563
    %v574 = vmul.f32 %v563, %v573
    %vm575 = vcmp.eq.f32.partialorder %v563, inf
    %v576 = vsel %vm575, %v563, %v574
    %vm577 = vcmp.eq.f32.partialorder %v563, 0.0
    %v578 = vand.u32 %v563, 2147483648
    %v579 = vsel %vm577, %v578, %v576
    %v580 = vrsqrt.pop %v564
    %v581 = vmul.f32 %v564, %v580
    %vm582 = vcmp.eq.f32.partialorder %v564, inf
    %v583 = vsel %vm582, %v564, %v581
    %vm584 = vcmp.eq.f32.partialorder %v564, 0.0
    %v585 = vand.u32 %v564, 2147483648
    %v586 = vsel %vm584, %v585, %v583
    %v587 = vrsqrt.pop %v565
    %v588 = vmul.f32 %v565, %v587
    %vm589 = vcmp.eq.f32.partialorder %v565, inf
    %v590 = vsel %vm589, %v565, %v588
    %vm591 = vcmp.eq.f32.partialorder %v565, 0.0
    %v592 = vand.u32 %v565, 2147483648
    %v593 = vsel %vm591, %v592, %v590
    %v594 = vadd.f32 %v562, 1e-16
    %v595 = vadd.f32 %v563, 1e-16
    %v596 = vadd.f32 %v564, 1e-16
    %v597 = vadd.f32 %v565, 1e-16
    %v598 = vlog2.pop %v594
    %v599 = vmul.f32 %v598, 0.6931472
    %v600 = vlog2.pop %v595
    %v601 = vmul.f32 %v600, 0.6931472
    %v602 = vlog2.pop %v596
    %v603 = vmul.f32 %v602, 0.6931472
    %v604 = vlog2.pop %v597
    %v605 = vmul.f32 %v604, 0.6931472
    %v606 = vmul.f32 %v599, 0.5
    %v607 = vmul.f32 %v601, 0.5
    %v608 = vmul.f32 %v603, 0.5
    %v609 = vmul.f32 %v605, 0.5
    %v610 = vadd.f32 %v562, %v563
    %611 = vadd.xlane.f32.xlu0 %v610
    %v612 = vpop.xlane.xlu0 %611
    %v613 = vadd.f32 %v564, %v565
    %614 = vadd.xlane.f32.xlu0 %v613
    %v615 = vpop.xlane.xlu0 %614
    %v616 = vpack.c.bf16 %v586, %v572
    %v617 = vpack.c.bf16 %v593, %v579
    %v618 = vld [vmem:[%s2] sm:$0xf]
    %v619 = vld [vmem:[%s2 + $0x4] sm:$0xf]
    %v620 = vld [vmem:[%s2 + $0x8] sm:$0xf]
    %v621 = vld [vmem:[%s2 + $0xc] sm:$0xf]
    %v622 = vld [vmem:[%s2 + $0x10] sm:$0xf]
    %v623 = vld [vmem:[%s2 + $0x14] sm:$0xf]
    %v624 = vld [vmem:[%s2 + $0x18] sm:$0xf]
    %v625 = vld [vmem:[%s2 + $0x1c] sm:$0xf]
    %v626 = vld [vmem:[%s2 + $0x20] sm:$0xf]
    %v627 = vld [vmem:[%s2 + $0x24] sm:$0xf]
    %v628 = vld [vmem:[%s2 + $0x28] sm:$0xf]
    %v629 = vld [vmem:[%s2 + $0x2c] sm:$0xf]
    %v630 = vld [vmem:[%s2 + $0x30] sm:$0xf]
    %v631 = vld [vmem:[%s2 + $0x34] sm:$0xf]
    %v632 = vld [vmem:[%s2 + $0x38] sm:$0xf]
    %v633 = vld [vmem:[%s2 + $0x3c] sm:$0xf]
    %v634 = vld [vmem:[%s2 + $0x40] sm:$0xf]
    %v635 = vld [vmem:[%s2 + $0x44] sm:$0xf]
    %v636 = vld [vmem:[%s2 + $0x48] sm:$0xf]
    %v637 = vld [vmem:[%s2 + $0x4c] sm:$0xf]
    %v638 = vld [vmem:[%s2 + $0x50] sm:$0xf]
    %v639 = vld [vmem:[%s2 + $0x54] sm:$0xf]
    %v640 = vld [vmem:[%s2 + $0x58] sm:$0xf]
    %v641 = vld [vmem:[%s2 + $0x5c] sm:$0xf]
    %v642 = vld [vmem:[%s2 + $0x60] sm:$0xf]
    %v643 = vld [vmem:[%s2 + $0x64] sm:$0xf]
    %v644 = vld [vmem:[%s2 + $0x68] sm:$0xf]
    %v645 = vld [vmem:[%s2 + $0x6c] sm:$0xf]
    %v646 = vld [vmem:[%s2 + $0x70] sm:$0xf]
    %v647 = vld [vmem:[%s2 + $0x74] sm:$0xf]
    %v648 = vld [vmem:[%s2 + $0x78] sm:$0xf]
    %v649 = vld [vmem:[%s2 + $0x7c] sm:$0xf]
    %v650 = vpack.c.bf16 %v608, %v606
    %v651 = vpack.c.bf16 %v609, %v607
    %v652 = vld [vmem:[#allocation5] sm:$0xf]
    %v653 = vld [vmem:[#allocation5 + $0x4] sm:$0xf]
    %v654 = vld [vmem:[#allocation5 + $0x8] sm:$0xf]
    %v655 = vld [vmem:[#allocation5 + $0xc] sm:$0xf]
    %v656 = vld [vmem:[#allocation5 + $0x10] sm:$0xf]
    %v657 = vld [vmem:[#allocation5 + $0x14] sm:$0xf]
    %v658 = vld [vmem:[#allocation5 + $0x18] sm:$0xf]
    %v659 = vld [vmem:[#allocation5 + $0x1c] sm:$0xf]
    %v660 = vld [vmem:[#allocation5 + $0x20] sm:$0xf]
    %v661 = vld [vmem:[#allocation5 + $0x24] sm:$0xf]
    %v662 = vld [vmem:[#allocation5 + $0x28] sm:$0xf]
    %v663 = vld [vmem:[#allocation5 + $0x2c] sm:$0xf]
    %v664 = vld [vmem:[#allocation5 + $0x30] sm:$0xf]
    %v665 = vld [vmem:[#allocation5 + $0x34] sm:$0xf]
    %v666 = vld [vmem:[#allocation5 + $0x38] sm:$0xf]
    %v667 = vld [vmem:[#allocation5 + $0x3c] sm:$0xf]
    %v668 = vld [vmem:[#allocation5 + $0x40] sm:$0xf]
    %v669 = vld [vmem:[#allocation5 + $0x44] sm:$0xf]
    %v670 = vld [vmem:[#allocation5 + $0x48] sm:$0xf]
    %v671 = vld [vmem:[#allocation5 + $0x4c] sm:$0xf]
    %v672 = vld [vmem:[#allocation5 + $0x50] sm:$0xf]
    %v673 = vld [vmem:[#allocation5 + $0x54] sm:$0xf]
    %v674 = vld [vmem:[#allocation5 + $0x58] sm:$0xf]
    %v675 = vld [vmem:[#allocation5 + $0x5c] sm:$0xf]
    %v676 = vld [vmem:[#allocation5 + $0x60] sm:$0xf]
    %v677 = vld [vmem:[#allocation5 + $0x64] sm:$0xf]
    %v678 = vld [vmem:[#allocation5 + $0x68] sm:$0xf]
    %v679 = vld [vmem:[#allocation5 + $0x6c] sm:$0xf]
    %v680 = vld [vmem:[#allocation5 + $0x70] sm:$0xf]
    %v681 = vld [vmem:[#allocation5 + $0x74] sm:$0xf]
    %v682 = vld [vmem:[#allocation5 + $0x78] sm:$0xf]
    %v683 = vld [vmem:[#allocation5 + $0x7c] sm:$0xf]
    %v716 = vunpack.c.l.b16 %v652
    %v717 = vunpack.c.l.b16 %v653
    %v718 = vunpack.c.l.b16 %v654
    %v719 = vunpack.c.l.b16 %v655
    %v720 = vunpack.c.l.b16 %v656
    %v721 = vunpack.c.l.b16 %v657
    %v722 = vunpack.c.l.b16 %v658
    %v723 = vunpack.c.l.b16 %v659
    %v724 = vunpack.c.l.b16 %v660
    %v725 = vunpack.c.l.b16 %v661
    %v726 = vunpack.c.l.b16 %v662
    %v727 = vunpack.c.l.b16 %v663
    %v728 = vunpack.c.l.b16 %v664
    %v729 = vunpack.c.l.b16 %v665
    %v730 = vunpack.c.l.b16 %v666
    %v731 = vunpack.c.l.b16 %v667
    %v732 = vunpack.c.l.b16 %v668
    %v733 = vunpack.c.l.b16 %v669
    %v734 = vunpack.c.l.b16 %v670
    %v735 = vunpack.c.l.b16 %v671
    %v736 = vunpack.c.l.b16 %v672
    %v737 = vunpack.c.l.b16 %v673
    %v738 = vunpack.c.l.b16 %v674
    %v739 = vunpack.c.l.b16 %v675
    %v740 = vunpack.c.l.b16 %v676
    %v741 = vunpack.c.l.b16 %v677
    %v742 = vunpack.c.l.b16 %v678
    %v743 = vunpack.c.l.b16 %v679
    %v744 = vunpack.c.l.b16 %v680
    %v745 = vunpack.c.l.b16 %v681
    %v746 = vunpack.c.l.b16 %v682
    %v747 = vunpack.c.l.b16 %v683
    %v748 = vpack.c.b16 %v717, %v716
    %v749 = vpack.c.b16 %v719, %v718
    %v750 = vpack.c.b16 %v721, %v720
    %v751 = vpack.c.b16 %v723, %v722
    %v752 = vpack.c.b16 %v725, %v724
    %v753 = vpack.c.b16 %v727, %v726
    %v754 = vpack.c.b16 %v729, %v728
    %v755 = vpack.c.b16 %v731, %v730
    %v756 = vpack.c.b16 %v733, %v732
    %v757 = vpack.c.b16 %v735, %v734
    %v758 = vpack.c.b16 %v737, %v736
    %v759 = vpack.c.b16 %v739, %v738
    %v760 = vpack.c.b16 %v741, %v740
    %v761 = vpack.c.b16 %v743, %v742
    %v762 = vpack.c.b16 %v745, %v744
    %v763 = vpack.c.b16 %v747, %v746
    %780 = vmatprep.subr.bf16.mxu0 0
    %781 = vmatpush1.bf16.msra.mxu0 %v755
    %782 = vmatprep.subr.bf16.mxu0 0
    %783 = vmatpush1.bf16.msra.mxu0 %v754
    %784 = vmatprep.subr.bf16.mxu0 0
    %785 = vmatpush1.bf16.msra.mxu0 %v753
    %786 = vmatprep.subr.bf16.mxu0 0
    %787 = vmatpush1.bf16.msra.mxu0 %v752
    %788 = vmatprep.subr.bf16.mxu0 0
    %789 = vmatpush1.bf16.msra.mxu0 %v751
    %790 = vmatprep.subr.bf16.mxu0 0
    %791 = vmatpush1.bf16.msra.mxu0 %v750
    %792 = vmatprep.subr.bf16.mxu0 0
    %793 = vmatpush1.bf16.msra.mxu0 %v749
    %794 = vmatprep.subr.bf16.mxu0 0
    %795 = vmatpush1.bf16.msra.mxu0 %v748
    %796 = vmatprep.subr.bf16.mxu0 0
    %797 = vmatpush2.bf16.msra.mxu0 %v763
    %798 = vmatprep.subr.bf16.mxu0 0
    %799 = vmatpush2.bf16.msra.mxu0 %v762
    %800 = vmatprep.subr.bf16.mxu0 0
    %801 = vmatpush2.bf16.msra.mxu0 %v761
    %802 = vmatprep.subr.bf16.mxu0 0
    %803 = vmatpush2.bf16.msra.mxu0 %v760
    %804 = vmatprep.subr.bf16.mxu0 0
    %805 = vmatpush2.bf16.msra.mxu0 %v759
    %806 = vmatprep.subr.bf16.mxu0 0
    %807 = vmatpush2.bf16.msra.mxu0 %v758
    %808 = vmatprep.subr.bf16.mxu0 0
    %809 = vmatpush2.bf16.msra.mxu0 %v757
    %810 = vmatprep.subr.bf16.mxu0 0
    %811 = vmatpush2.bf16.msra.mxu0 %v756
    %812 = vmatprep.mubr.bf16.mxu0 %v651
    %813 = vmatmul.mubr.bf16.gmra.mxu0 %v650
    %v814 = vpop.f32.mrf.mxu0
    %v815 = vadd.f32 0.0, %v814
    %v816 = vpop.f32.mrf.mxu0
    %v817 = vpop.f32.mrf.mxu0
    %v818 = vadd.f32 0.0, %v817
    %v819 = vpop.f32.mrf.mxu0
    %820 = vdwg.mxu0
    %v853 = vunpack.c.l.b16 %v618
    %v854 = vunpack.c.l.b16 %v619
    %v855 = vunpack.c.l.b16 %v620
    %v856 = vunpack.c.l.b16 %v621
    %v857 = vunpack.c.l.b16 %v622
    %v858 = vunpack.c.l.b16 %v623
    %v859 = vunpack.c.l.b16 %v624
    %v860 = vunpack.c.l.b16 %v625
    %v861 = vunpack.c.l.b16 %v626
    %v862 = vunpack.c.l.b16 %v627
    %v863 = vunpack.c.l.b16 %v628
    %v864 = vunpack.c.l.b16 %v629
    %v865 = vunpack.c.l.b16 %v630
    %v866 = vunpack.c.l.b16 %v631
    %v867 = vunpack.c.l.b16 %v632
    %v868 = vunpack.c.l.b16 %v633
    %v869 = vunpack.c.l.b16 %v634
    %v870 = vunpack.c.l.b16 %v635
    %v871 = vunpack.c.l.b16 %v636
    %v872 = vunpack.c.l.b16 %v637
    %v873 = vunpack.c.l.b16 %v638
    %v874 = vunpack.c.l.b16 %v639
    %v875 = vunpack.c.l.b16 %v640
    %v876 = vunpack.c.l.b16 %v641
    %v877 = vunpack.c.l.b16 %v642
    %v878 = vunpack.c.l.b16 %v643
    %v879 = vunpack.c.l.b16 %v644
    %v880 = vunpack.c.l.b16 %v645
    %v881 = vunpack.c.l.b16 %v646
    %v882 = vunpack.c.l.b16 %v647
    %v883 = vunpack.c.l.b16 %v648
    %v884 = vunpack.c.l.b16 %v649
    %v885 = vpack.c.b16 %v854, %v853
    %v886 = vpack.c.b16 %v856, %v855
    %v887 = vpack.c.b16 %v858, %v857
    %v888 = vpack.c.b16 %v860, %v859
    %v889 = vpack.c.b16 %v862, %v861
    %v890 = vpack.c.b16 %v864, %v863
    %v891 = vpack.c.b16 %v866, %v865
    %v892 = vpack.c.b16 %v868, %v867
    %v893 = vpack.c.b16 %v870, %v869
    %v894 = vpack.c.b16 %v872, %v871
    %v895 = vpack.c.b16 %v874, %v873
    %v896 = vpack.c.b16 %v876, %v875
    %v897 = vpack.c.b16 %v878, %v877
    %v898 = vpack.c.b16 %v880, %v879
    %v899 = vpack.c.b16 %v882, %v881
    %v900 = vpack.c.b16 %v884, %v883
    %917 = vmatprep.subr.bf16.mxu0 0
    %918 = vmatpush1.bf16.msra.mxu0 %v892
    %919 = vmatprep.subr.bf16.mxu0 0
    %920 = vmatpush1.bf16.msra.mxu0 %v891
    %921 = vmatprep.subr.bf16.mxu0 0
    %922 = vmatpush1.bf16.msra.mxu0 %v890
    %923 = vmatprep.subr.bf16.mxu0 0
    %924 = vmatpush1.bf16.msra.mxu0 %v889
    %925 = vmatprep.subr.bf16.mxu0 0
    %926 = vmatpush1.bf16.msra.mxu0 %v888
    %927 = vmatprep.subr.bf16.mxu0 0
    %928 = vmatpush1.bf16.msra.mxu0 %v887
    %929 = vmatprep.subr.bf16.mxu0 0
    %930 = vmatpush1.bf16.msra.mxu0 %v886
    %931 = vmatprep.subr.bf16.mxu0 0
    %932 = vmatpush1.bf16.msra.mxu0 %v885
    %933 = vmatprep.subr.bf16.mxu0 0
    %934 = vmatpush2.bf16.msra.mxu0 %v900
    %935 = vmatprep.subr.bf16.mxu0 0
    %936 = vmatpush2.bf16.msra.mxu0 %v899
    %937 = vmatprep.subr.bf16.mxu0 0
    %938 = vmatpush2.bf16.msra.mxu0 %v898
    %939 = vmatprep.subr.bf16.mxu0 0
    %940 = vmatpush2.bf16.msra.mxu0 %v897
    %941 = vmatprep.subr.bf16.mxu0 0
    %942 = vmatpush2.bf16.msra.mxu0 %v896
    %943 = vmatprep.subr.bf16.mxu0 0
    %944 = vmatpush2.bf16.msra.mxu0 %v895
    %945 = vmatprep.subr.bf16.mxu0 0
    %946 = vmatpush2.bf16.msra.mxu0 %v894
    %947 = vmatprep.subr.bf16.mxu0 0
    %948 = vmatpush2.bf16.msra.mxu0 %v893
    %949 = vmatprep.mubr.bf16.mxu0 %v617
    %950 = vmatmul.mubr.bf16.gmra.mxu0 %v616
    %v951 = vpop.f32.mrf.mxu0
    %v952 = vadd.f32 %v815, %v951
    %v953 = vpop.f32.mrf.mxu0
    %v954 = vpop.f32.mrf.mxu0
    %v955 = vadd.f32 %v818, %v954
    %v956 = vpop.f32.mrf.mxu0
    %957 = vdwg.mxu0
    %v958 = vlaneseq
    %v959 = vand.u32 %v958, 127
    %vm960 = vcmp.eq.s32.totalorder %v959, 0
    %v961 = vsel %vm960, %v612, %v952
    %v962 = vsel %vm960, %v615, %v955
    %963 = vst [vmem:[%s5] sm:$0xff] %v961
    %964 = vst [vmem:[%s5 + $0x8] sm:$0xff] %v962
    %v969 = vrot.slane %v475, 7
    %v970 = vrot.slane %v477, 7
    %v971 = vrot.slane %v479, 7
    %v972 = vrot.slane %v481, 7
    %v977 = vmul.f32 %v518, %v969
    %v978 = vmul.f32 %v520, %v970
    %v979 = vmul.f32 %v522, %v971
    %v980 = vmul.f32 %v524, %v972
    %v985 = vrot.slane %v518, 7
    %v986 = vrot.slane %v520, 7
    %v987 = vrot.slane %v522, 7
    %v988 = vrot.slane %v524, 7
    %v993 = vmul.f32 %v475, %v985
    %v994 = vmul.f32 %v477, %v986
    %v995 = vmul.f32 %v479, %v987
    %v996 = vmul.f32 %v481, %v988
    %v997 = vsub.f32 %v977, %v993
    %v998 = vsub.f32 %v978, %v994
    %v999 = vsub.f32 %v979, %v995
    %v1000 = vsub.f32 %v980, %v996
    %v1005 = vrot.slane %v562, 7
    %v1006 = vrot.slane %v563, 7
    %v1007 = vrot.slane %v564, 7
    %v1008 = vrot.slane %v565, 7
    %v1013 = vmul.f32 %v562, %v1005
    %v1014 = vmul.f32 %v563, %v1006
    %v1015 = vmul.f32 %v564, %v1007
    %v1016 = vmul.f32 %v565, %v1008
    %v1017 = vmax.f32 %v1013, 1e-18
    %v1018 = vmax.f32 %v1014, 1e-18
    %v1019 = vmax.f32 %v1015, 1e-18
    %v1020 = vmax.f32 %v1016, 1e-18
    %v1021 = vrsqrt.pop %v1017
    %v1022 = vrsqrt.pop %v1018
    %v1023 = vrsqrt.pop %v1019
    %v1024 = vrsqrt.pop %v1020
    %v1025 = vmul.f32 %v997, %v1021
    %v1026 = vmul.f32 %v998, %v1022
    %v1027 = vmul.f32 %v999, %v1023
    %v1028 = vmul.f32 %v1000, %v1024
    %v1033 = vrot.slane %v1025, 1
    %v1034 = vrot.slane %v1026, 1
    %v1035 = vrot.slane %v1027, 1
    %v1036 = vrot.slane %v1028, 1
    %vm1041 = vcmask 1046528
    %v1042 = vsel %vm1041, %v1033, 0.0
    %v1043 = vrot.slane %v1042, 4
    %v1044 = vadd.f32 %v1042, %v1043
    %v1045 = vrot.slane %v1044, 2
    %v1046 = vadd.f32 %v1044, %v1045
    %v1047 = vrot.slane %v1046, 1
    %v1048 = vadd.f32 %v1046, %v1047
    %v1049 = vsel %vm1041, %v1034, 0.0
    %v1050 = vrot.slane %v1049, 4
    %v1051 = vadd.f32 %v1049, %v1050
    %v1052 = vrot.slane %v1051, 2
    %v1053 = vadd.f32 %v1051, %v1052
    %v1054 = vrot.slane %v1053, 1
    %v1055 = vadd.f32 %v1053, %v1054
    %v1056 = vsel %vm1041, %v1035, 0.0
    %v1057 = vrot.slane %v1056, 4
    %v1058 = vadd.f32 %v1056, %v1057
    %v1059 = vrot.slane %v1058, 2
    %v1060 = vadd.f32 %v1058, %v1059
    %v1061 = vrot.slane %v1060, 1
    %v1062 = vadd.f32 %v1060, %v1061
    %v1063 = vsel %vm1041, %v1036, 0.0
    %v1064 = vrot.slane %v1063, 4
    %v1065 = vadd.f32 %v1063, %v1064
    %v1066 = vrot.slane %v1065, 2
    %v1067 = vadd.f32 %v1065, %v1066
    %v1068 = vrot.slane %v1067, 1
    %v1069 = vadd.f32 %v1067, %v1068
    %v1070 = vrcp.pop 7.0
    %v1071 = vmul.f32 %v1048, %v1070
    %v1072 = vmul.f32 %v1055, %v1070
    %v1073 = vmul.f32 %v1062, %v1070
    %v1074 = vmul.f32 %v1069, %v1070
    %v1079 = vcombine.low %v1071, %v1072
    %v1081 = vunpack.c.l.s4 1983009808
    %v1082 = vunpack.c.0.s8 %v1081
    %v1083 = vlaneseq
    %v1084 = vshrl.u32 %v1083, 7
    %v1085 = vsub.s32 %v1082, %v1084
    %v1086 = vrot.slane %v1079, %v1085
    %v1087 = vcombine.low %v1073, %v1074
    %v1089 = vunpack.c.l.s4 1983009808
    %v1090 = vunpack.c.0.s8 %v1089
    %v1091 = vlaneseq
    %v1092 = vshrl.u32 %v1091, 7
    %v1093 = vsub.s32 %v1090, %v1092
    %v1094 = vrot.slane %v1087, %v1093
    %vm1095 = vcmask 1044484
    %v1096 = vsel %vm1095, %v1086, %v1086
    %vm1097 = vcmask 1046534
    %v1098 = vsel %vm1097, %v1086, %v1096
    %v1099 = vrot.slane %v1094, 7
    %vm1100 = vcmask 1041409
    %v1101 = vsel %vm1100, %v1099, %v1098
    %vm1102 = vcmask 1043459
    %v1103 = vsel %vm1102, %v1099, %v1101
    %vm1104 = vcmask 1045509
    %v1105 = vsel %vm1104, %v1099, %v1103
    %vm1106 = vcmask 1047559
    %v1107 = vsel %vm1106, %v1099, %v1105
    %1109 = vst [vmem:[#allocation7] sm:$0xf] %v1107
    // Predicated region
    $region26: #{audio_features.1} parent=1 // pred_check
      _
    $region27: #{audio_features.1} parent=1 // pred_check_branch
      %1111 = sbr.rel (0) target = $region29
    $region28: #{audio_features.1} parent=1 // pred_region
      _
    $region29: #{audio_features.1} parent=1 // pred_fallthru
      _
    // Predicated region
    $region30: #{audio_features.1} parent=1 // pred_check
      _
    $region31: #{audio_features.1} parent=1 // pred_check_branch
      %1113 = sbr.rel (0) target = $region33
    $region32: #{audio_features.1} parent=1 // pred_region
      _
    $region33: #{audio_features.1} parent=1 // pred_fallthru
      _
    // Predicated region
    $region34: #{audio_features.1} parent=1 // pred_check
      _
    $region35: #{audio_features.1} parent=1 // pred_check_branch
      %1115 = sbr.rel (0) target = $region37
    $region36: #{audio_features.1} parent=1 // pred_region
      %s1117 = ssub.s32 64, 64
      %1118 = vsyncadd [#allocation4], %s1117
      %s1120 = sshll.u32 [#allocation7], 4
      %s1121 = int_to_ptr.vmem [resolvable:$true] %s1120
      %1123 = dma.vmem_to_hbm [thread:$0]  %s1121, 64, %s6, [#allocation4]
    $region37: #{audio_features.1} parent=1 // pred_fallthru
      _
    // Predicated region
    $region38: #{audio_features.1} parent=1 // pred_check
      _
    $region39: #{audio_features.1} parent=1 // pred_check_branch
      %1125 = sbr.rel (0) target = $region41
    $region40: #{audio_features.1} parent=1 // pred_region
      _
    $region41: #{audio_features.1} parent=1 // pred_fallthru
      _
    // Predicated region
    $region42: #{audio_features.1} parent=1 // pred_check
      _
    $region43: #{audio_features.1} parent=1 // pred_check_branch
      %1127 = sbr.rel (0) target = $region45
    $region44: #{audio_features.1} parent=1 // pred_region
      _
    $region45: #{audio_features.1} parent=1 // pred_fallthru
      _
    // Predicated region
    $region46: #{audio_features.1} parent=1 // pred_check
      _
    $region47: #{audio_features.1} parent=1 // pred_check_branch
      %1129 = sbr.rel (0) target = $region49
    $region48: #{audio_features.1} parent=1 // pred_region
      %1130 = dma.done [#allocation4], 64
    $region49: #{audio_features.1} parent=1 // pred_fallthru
      _
    %1131 = vsyncpa [#allocation3], 1
    %1132 = vsyncpa [#allocation6], 1
    %1133 = vsyncpa [#allocation4], 1

</llo_original>
